<compile_context>
chip_gen: v5e
topology: v5e:2x2
jax: 0.10.0
libtpu: 0.0.40
codegen_flags: <defaults>
</compile_context>

<pallas_src>
import functools

import jax
import jax.numpy as jnp
from jax.experimental import pallas as pl
from jax.experimental.pallas import tpu as pltpu

LN_EPS = 1e-5
LANE = 128


def _round_up(n, m):
    return ((n + m - 1) // m) * m


def _mlp_kernel(x_ref, w1_ref, b1_ref, g_ref, be_ref, w2_ref, b2_ref, o_ref):
    # First linear: [TB, in_dim] @ [in_dim, hidden], f32 accumulation on MXU.
    h = jnp.dot(x_ref[...], w1_ref[...], preferred_element_type=jnp.float32)
    h = h + b1_ref[...]

    # LayerNorm over the hidden axis (biased variance, like torch), all in f32.
    mean = jnp.mean(h, axis=-1, keepdims=True)
    centered = h - mean
    var = jnp.mean(centered * centered, axis=-1, keepdims=True)
    hn = centered * jax.lax.rsqrt(var + LN_EPS)
    hn = hn * g_ref[...] + be_ref[...]

    # ReLU
    hn = jnp.maximum(hn, 0.0)

    # Dropout(p=0.3): eval-mode identity.
    # TODO(synk): training-mode dropout (mask + 1/(1-p) scale) not implemented.

    # Second linear: [TB, hidden] @ [hidden, out_pad] (out_pad is lane-dense).
    out = jnp.dot(hn.astype(w2_ref.dtype), w2_ref[...],
                  preferred_element_type=jnp.float32)
    out = out + b2_ref[...]
    o_ref[...] = out.astype(o_ref.dtype)


@functools.partial(jax.jit, static_argnames=("tile_b", "compute_dtype"))
def symptom_mlp(x, w1, b1, gamma, beta, w2, b2, *, tile_b=None,
                compute_dtype=jnp.float32):
    B, in_dim = x.shape
    hidden = w1.shape[1]
    out_dim = w2.shape[1]

    compute_dtype = jnp.dtype(compute_dtype)
    itemsize = compute_dtype.itemsize
    # Sublane packing granularity of the compute dtype: 8 rows for f32, 16 for bf16.
    row_align = max(8, 32 // itemsize)

    if tile_b is None:
        # Whole batch in one block for small B; cap at 256 rows for large B
        # (fills the 256-row MXU on v6e/v7x, 2x128 passes on v5e, keeps >=2
        # parallel grid steps for both v7x TensorCores, and keeps x tiles tiny
        # relative to v7x's 32 MiB scoped VMEM).
        tile_b = min(_round_up(B, row_align), 256)
    tile_b = _round_up(tile_b, row_align)

    b_pad = _round_up(B, tile_b)
    out_pad = _round_up(out_dim, LANE)

    # Matmul operands in the compute dtype (bf16 on v6e/v7x for MXU rate + DMA
    # bytes); batch padded to the tile, out_dim padded to a lane multiple so
    # the output store path is unmasked.
    xp = x.astype(compute_dtype)
    if b_pad != B:
        xp = jnp.pad(xp, ((0, b_pad - B), (0, 0)))
    w1p = w1.astype(compute_dtype)
    w2p = w2.astype(compute_dtype)
    b2p = b2
    if out_pad != out_dim:
        w2p = jnp.pad(w2p, ((0, 0), (0, out_pad - out_dim)))
        b2p = jnp.pad(b2p, ((0, out_pad - out_dim),))

    # Element-wise params stay f32 (bias/LN math is f32 regardless of the
    # matmul dtype); 2-D (1, n) views keep them on the lane axis in VMEM.
    b1_2d = b1.reshape(1, hidden).astype(jnp.float32)
    gamma_2d = gamma.reshape(1, hidden).astype(jnp.float32)
    beta_2d = beta.reshape(1, hidden).astype(jnp.float32)
    b2_2d = b2p.reshape(1, out_pad).astype(jnp.float32)

    grid = (b_pad // tile_b,)

    cost = pl.CostEstimate(
        flops=2 * b_pad * in_dim * hidden + 2 * b_pad * hidden * out_pad,
        transcendentals=b_pad,  # one rsqrt per row (LayerNorm)
        bytes_accessed=(b_pad * in_dim * itemsize        # x
                        + in_dim * hidden * itemsize     # W1
                        + hidden * out_pad * itemsize    # W2
                        + 4 * (3 * hidden + out_pad)     # b1 / gamma / beta / b2
                        + b_pad * out_pad * 4),          # out (f32)
    )

    out = pl.pallas_call(
        _mlp_kernel,
        out_shape=jax.ShapeDtypeStruct((b_pad, out_pad), jnp.float32),
        grid_spec=pltpu.PrefetchScalarGridSpec(
            num_scalar_prefetch=0,
            grid=grid,
            in_specs=[
                pl.BlockSpec((tile_b, in_dim), lambda i: (i, 0)),    # x tile
                # Constant-index blocks below: same (0, 0) block every step,
                # so they are only DMA'd once by the pipeline.
                pl.BlockSpec((in_dim, hidden), lambda i: (0, 0)),    # W1 (full)
                pl.BlockSpec((1, hidden), lambda i: (0, 0)),         # b1
                pl.BlockSpec((1, hidden), lambda i: (0, 0)),         # LN gamma
                pl.BlockSpec((1, hidden), lambda i: (0, 0)),         # LN beta
                pl.BlockSpec((hidden, out_pad), lambda i: (0, 0)),   # W2 (full)
                pl.BlockSpec((1, out_pad), lambda i: (0, 0)),        # b2
            ],
            out_specs=pl.BlockSpec((tile_b, out_pad), lambda i: (i, 0)),
        ),
        compiler_params=pltpu.CompilerParams(
            dimension_semantics=("parallel",),
        ),
        cost_estimate=cost,
    )(xp, w1p, b1_2d, gamma_2d, beta_2d, w2p, b2_2d)

    # Strip batch / output-channel padding.
    return out[:B, :out_dim]


def _reference(x, w1, b1, gamma, beta, w2, b2):
    h = x @ w1 + b1
    mean = jnp.mean(h, axis=-1, keepdims=True)
    var = jnp.mean((h - mean) ** 2, axis=-1, keepdims=True)
    hn = (h - mean) * jax.lax.rsqrt(var + LN_EPS) * gamma + beta
    hn = jnp.maximum(hn, 0.0)
    return hn @ w2 + b2


if __name__ == "__main__":
    # Module shapes: in_dim=768, hidden=128, out_dim=54; small batch of 16.
    B, in_dim, hidden, out_dim = 16, 768, 128, 54

    key = jax.random.PRNGKey(0)
    kx, kw1, kb1, kw2, kb2 = jax.random.split(key, 5)

    x = jax.random.normal(kx, (B, in_dim), dtype=jnp.float32)

    # Deterministic synthetic parameters (uniform, roughly torch-Linear scale).
    lim1 = 1.0 / (in_dim ** 0.5)
    w1 = jax.random.uniform(kw1, (in_dim, hidden), jnp.float32, -lim1, lim1)
    b1 = jax.random.uniform(kb1, (hidden,), jnp.float32, -lim1, lim1)
    gamma = jnp.ones((hidden,), jnp.float32)
    beta = jnp.zeros((hidden,), jnp.float32)
    lim2 = 1.0 / (hidden ** 0.5)
    w2 = jax.random.uniform(kw2, (hidden, out_dim), jnp.float32, -lim2, lim2)
    b2 = jax.random.uniform(kb2, (out_dim,), jnp.float32, -lim2, lim2)

    ref = _reference(x, w1, b1, gamma, beta, w2, b2)

    # f32 path (default): single lane-dense block for the whole batch.
    out_f32 = jax.block_until_ready(symptom_mlp(x, w1, b1, gamma, beta, w2, b2))
    assert out_f32.shape == (B, out_dim), out_f32.shape
    assert jnp.allclose(out_f32, ref, atol=1e-4, rtol=1e-4), float(
        jnp.max(jnp.abs(out_f32 - ref))
    )

    # bf16 matmul path (v6e/v7x bandwidth + MXU-rate optimization); LN / bias
    # math stays f32 inside the kernel, so only rounding of x/W1/W2 differs.
    out_bf16 = jax.block_until_ready(
        symptom_mlp(x, w1, b1, gamma, beta, w2, b2, compute_dtype=jnp.bfloat16)
    )
    assert out_bf16.shape == (B, out_dim), out_bf16.shape
    err_bf16 = float(jnp.max(jnp.abs(out_bf16 - ref)))
    assert err_bf16 < 0.1, err_bf16

    print("KERNEL_OK")
</pallas_src>

<mosaic_0001>
module attributes {stable_mosaic.version = 11 : i64} {
  func.func @_mlp_kernel(%arg0: i32, %arg1: memref<16x768xf32, #tpu.memory_space<vmem>>, %arg2: memref<768x128xf32, #tpu.memory_space<vmem>>, %arg3: memref<1x128xf32, #tpu.memory_space<vmem>>, %arg4: memref<1x128xf32, #tpu.memory_space<vmem>>, %arg5: memref<1x128xf32, #tpu.memory_space<vmem>>, %arg6: memref<128x128xf32, #tpu.memory_space<vmem>>, %arg7: memref<1x128xf32, #tpu.memory_space<vmem>>, %arg8: memref<16x128xf32, #tpu.memory_space<vmem>>) attributes {dimension_semantics = [#tpu.dimension_semantics<parallel>], iteration_bounds = array<i64: 1>, scalar_prefetch = 0 : i64, scratch_operands = 0 : i64, tpu.core_type = #tpu.core_type<tc>, window_params = [{transform_indices = @transform_0, window_bounds = array<i64: 16, 768>}, {pipeline_mode = #tpu.pipeline_mode<synchronous>, transform_indices = @transform_1, window_bounds = array<i64: 768, 128>}, {pipeline_mode = #tpu.pipeline_mode<synchronous>, transform_indices = @transform_2, window_bounds = array<i64: 1, 128>}, {pipeline_mode = #tpu.pipeline_mode<synchronous>, transform_indices = @transform_3, window_bounds = array<i64: 1, 128>}, {pipeline_mode = #tpu.pipeline_mode<synchronous>, transform_indices = @transform_4, window_bounds = array<i64: 1, 128>}, {pipeline_mode = #tpu.pipeline_mode<synchronous>, transform_indices = @transform_5, window_bounds = array<i64: 128, 128>}, {pipeline_mode = #tpu.pipeline_mode<synchronous>, transform_indices = @transform_6, window_bounds = array<i64: 1, 128>}, {transform_indices = @transform_7, window_bounds = array<i64: 16, 128>}]} {
    %c0 = arith.constant 0 : index
    %c0_0 = arith.constant 0 : index
    %0 = vector.load %arg1[%c0, %c0_0] : memref<16x768xf32, #tpu.memory_space<vmem>>, vector<16x768xf32>
    %c0_1 = arith.constant 0 : index
    %c0_2 = arith.constant 0 : index
    %1 = vector.load %arg2[%c0_1, %c0_2] : memref<768x128xf32, #tpu.memory_space<vmem>>, vector<768x128xf32>
    %cst = arith.constant dense<0.000000e+00> : vector<16x128xf32>
    %2 = tpu.matmul %0, %1, %cst {dimension_numbers = #tpu.dot_dimension_numbers<[1], [0], [0], [1], [0, 0, 1, 1], [], []>} : vector<16x768xf32>, vector<768x128xf32>, vector<16x128xf32> -> vector<16x128xf32>
    %c0_3 = arith.constant 0 : index
    %c0_4 = arith.constant 0 : index
    %3 = vector.load %arg3[%c0_3, %c0_4] : memref<1x128xf32, #tpu.memory_space<vmem>>, vector<1x128xf32>
    %4 = vector.broadcast %3 : vector<1x128xf32> to vector<16x128xf32>
    %5 = arith.addf %2, %4 : vector<16x128xf32>
    %cst_5 = arith.constant dense<0.000000e+00> : vector<16xf32>
    %6 = vector.multi_reduction <add>, %5, %cst_5 [1] : vector<16x128xf32> to vector<16xf32>
    %7 = vector.shape_cast %6 : vector<16xf32> to vector<16x1xf32>
    %cst_6 = arith.constant 1.280000e+02 : f32
    %8 = vector.broadcast %cst_6 : f32 to vector<16x1xf32>
    %9 = arith.divf %7, %8 : vector<16x1xf32>
    %10 = vector.broadcast %9 : vector<16x1xf32> to vector<16x128xf32>
    %11 = arith.subf %5, %10 : vector<16x128xf32>
    %12 = arith.mulf %11, %11 : vector<16x128xf32>
    %cst_7 = arith.constant dense<0.000000e+00> : vector<16xf32>
    %13 = vector.multi_reduction <add>, %12, %cst_7 [1] : vector<16x128xf32> to vector<16xf32>
    %14 = vector.shape_cast %13 : vector<16xf32> to vector<16x1xf32>
    %cst_8 = arith.constant 1.280000e+02 : f32
    %15 = vector.broadcast %cst_8 : f32 to vector<16x1xf32>
    %16 = arith.divf %14, %15 : vector<16x1xf32>
    %cst_9 = arith.constant 9.99999974E-6 : f32
    %17 = vector.broadcast %cst_9 : f32 to vector<16x1xf32>
    %18 = arith.addf %16, %17 : vector<16x1xf32>
    %19 = math.rsqrt %18 : vector<16x1xf32>
    %20 = vector.broadcast %19 : vector<16x1xf32> to vector<16x128xf32>
    %21 = arith.mulf %11, %20 : vector<16x128xf32>
    %c0_10 = arith.constant 0 : index
    %c0_11 = arith.constant 0 : index
    %22 = vector.load %arg4[%c0_10, %c0_11] : memref<1x128xf32, #tpu.memory_space<vmem>>, vector<1x128xf32>
    %23 = vector.broadcast %22 : vector<1x128xf32> to vector<16x128xf32>
    %24 = arith.mulf %21, %23 : vector<16x128xf32>
    %c0_12 = arith.constant 0 : index
    %c0_13 = arith.constant 0 : index
    %25 = vector.load %arg5[%c0_12, %c0_13] : memref<1x128xf32, #tpu.memory_space<vmem>>, vector<1x128xf32>
    %26 = vector.broadcast %25 : vector<1x128xf32> to vector<16x128xf32>
    %27 = arith.addf %24, %26 : vector<16x128xf32>
    %cst_14 = arith.constant 0.000000e+00 : f32
    %28 = vector.broadcast %cst_14 : f32 to vector<16x128xf32>
    %29 = arith.maximumf %27, %28 : vector<16x128xf32>
    %c0_15 = arith.constant 0 : index
    %c0_16 = arith.constant 0 : index
    %30 = vector.load %arg6[%c0_15, %c0_16] : memref<128x128xf32, #tpu.memory_space<vmem>>, vector<128x128xf32>
    %cst_17 = arith.constant dense<0.000000e+00> : vector<16x128xf32>
    %31 = tpu.matmul %29, %30, %cst_17 {dimension_numbers = #tpu.dot_dimension_numbers<[1], [0], [0], [1], [0, 0, 1, 1], [], []>} : vector<16x128xf32>, vector<128x128xf32>, vector<16x128xf32> -> vector<16x128xf32>
    %c0_18 = arith.constant 0 : index
    %c0_19 = arith.constant 0 : index
    %32 = vector.load %arg7[%c0_18, %c0_19] : memref<1x128xf32, #tpu.memory_space<vmem>>, vector<1x128xf32>
    %33 = vector.broadcast %32 : vector<1x128xf32> to vector<16x128xf32>
    %34 = arith.addf %31, %33 : vector<16x128xf32>
    %c0_20 = arith.constant 0 : index
    %c0_21 = arith.constant 0 : index
    %35 = vector.load %arg8[%c0_20, %c0_21] : memref<16x128xf32, #tpu.memory_space<vmem>>, vector<16x128xf32>
    tpu.vector_store %arg8[%c0_20, %c0_21], %34 {strides = array<i32>} : memref<16x128xf32, #tpu.memory_space<vmem>>, vector<16x128xf32>,
    return
  }
  func.func @transform_0(%arg0: i32) -> (i32, i32) {
    %c0_i32 = arith.constant 0 : i32
    %c0_i32_0 = arith.constant 0 : i32
    return %arg0, %c0_i32 : i32, i32
  }
  func.func @transform_1(%arg0: i32) -> (i32, i32) {
    %c0_i32 = arith.constant 0 : i32
    %c0_i32_0 = arith.constant 0 : i32
    %c0_i32_1 = arith.constant 0 : i32
    return %c0_i32, %c0_i32_0 : i32, i32
  }
  func.func @transform_2(%arg0: i32) -> (i32, i32) {
    %c0_i32 = arith.constant 0 : i32
    %c0_i32_0 = arith.constant 0 : i32
    %c0_i32_1 = arith.constant 0 : i32
    return %c0_i32, %c0_i32_0 : i32, i32
  }
  func.func @transform_3(%arg0: i32) -> (i32, i32) {
    %c0_i32 = arith.constant 0 : i32
    %c0_i32_0 = arith.constant 0 : i32
    %c0_i32_1 = arith.constant 0 : i32
    return %c0_i32, %c0_i32_0 : i32, i32
  }
  func.func @transform_4(%arg0: i32) -> (i32, i32) {
    %c0_i32 = arith.constant 0 : i32
    %c0_i32_0 = arith.constant 0 : i32
    %c0_i32_1 = arith.constant 0 : i32
    return %c0_i32, %c0_i32_0 : i32, i32
  }
  func.func @transform_5(%arg0: i32) -> (i32, i32) {
    %c0_i32 = arith.constant 0 : i32
    %c0_i32_0 = arith.constant 0 : i32
    %c0_i32_1 = arith.constant 0 : i32
    return %c0_i32, %c0_i32_0 : i32, i32
  }
  func.func @transform_6(%arg0: i32) -> (i32, i32) {
    %c0_i32 = arith.constant 0 : i32
    %c0_i32_0 = arith.constant 0 : i32
    %c0_i32_1 = arith.constant 0 : i32
    return %c0_i32, %c0_i32_0 : i32, i32
  }
  func.func @transform_7(%arg0: i32) -> (i32, i32) {
    %c0_i32 = arith.constant 0 : i32
    %c0_i32_0 = arith.constant 0 : i32
    return %arg0, %c0_i32 : i32, i32
  }
}

</mosaic_0001>

<llo_original>
// kernel: symptom_mlp.1
$region0: #{symptom_mlp.1}
  #allocation0 [shape = 'u32[]', space=smem, size = 0x4, offset = 0x4, fixed_abs, tag = 'smem constant byte address 0x4 - core index']
  #allocation1 [shape = 'u32[72,128]{1,0:T(1,128)}', space=vmem, size = 0x9000, scoped, tag = 'internal scratch']
  %s0 = inlined_call_operand.vmem [shape: f32[16,768], index: 0, kind: input, shape index: {}]
  %s1 = inlined_call_operand.hbm [shape: f32[768,128], index: 1, kind: input, shape index: {}]
  %s2 = inlined_call_operand.vmem [shape: f32[1,128], index: 2, kind: input, shape index: {}]
  %s3 = inlined_call_operand.vmem [shape: f32[1,128], index: 3, kind: input, shape index: {}]
  %s4 = inlined_call_operand.vmem [shape: f32[1,128], index: 4, kind: input, shape index: {}]
  %s5 = inlined_call_operand.vmem [shape: f32[128,128], index: 5, kind: input, shape index: {}]
  %s6 = inlined_call_operand.vmem [shape: f32[1,128], index: 6, kind: input, shape index: {}]
  %s7 = inlined_call_operand.hbm [shape: f32[16,128], index: 7, kind: output, shape index: {}]
  %s8 = sld [smem:[#allocation0]]
  $region42: #{symptom_mlp.1} parent=0
    _
  %s10 = ssub.s32 1, %s8
  %s11 = scalar_select 0, %s10, %s8
  $region1: #{symptom_mlp.1} parent=0
    #allocation2 [shape = 'u8[393216]{0}', space=vmem, size = 0x60000, scoped, tag = 'input window, operand 1, single buffered']
    #allocation3 [shape = 's32[1]{0}', space=sflag, size = 0x4, scoped, tag = 'scoped memory for symptom_mlp.1']
    #allocation4 [shape = 's32[1]{0}', space=sflag, size = 0x4, scoped, tag = 'scoped memory for symptom_mlp.1']
    #allocation5 [shape = 'u8[8192]{0}', space=vmem, size = 0x2000, scoped, tag = 'output window, operand 0, single buffered']
    %12 = vsyncpa [#allocation3], 0
    %13 = vsyncpa [#allocation4], 0
    // Predicated region
    $region2: #{symptom_mlp.1} parent=1 // pred_check
      _
    $region3: #{symptom_mlp.1} parent=1 // pred_check_branch
      %15 = sbr.rel (0) target = $region5
    $region4: #{symptom_mlp.1} parent=1 // pred_region
      _
    $region5: #{symptom_mlp.1} parent=1 // pred_fallthru
      _
    // Predicated region
    $region6: #{symptom_mlp.1} parent=1 // pred_check
      _
    $region7: #{symptom_mlp.1} parent=1 // pred_check_branch
      %17 = sbr.rel (0) target = $region9
    $region8: #{symptom_mlp.1} parent=1 // pred_region
      %19 = vsyncadd [#allocation3], 0
      %s20 = sshll.u32 %s1, 4
      %s21 = int_to_ptr.hbm [resolvable:$true] %s20
      %s22 = sshll.u32 [#allocation2], 4
      %s23 = int_to_ptr.vmem [resolvable:$true] %s22
      %28 = dma.hbm_to_vmem [thread:$0]  %s21, 12288, %s23, [#allocation3], 128, 128, 8
    $region9: #{symptom_mlp.1} parent=1 // pred_fallthru
      _
    // Predicated region
    $region10: #{symptom_mlp.1} parent=1 // pred_check
      _
    $region11: #{symptom_mlp.1} parent=1 // pred_check_branch
      %30 = sbr.rel (0) target = $region13
    $region12: #{symptom_mlp.1} parent=1 // pred_region
      _
    $region13: #{symptom_mlp.1} parent=1 // pred_fallthru
      _
    // Predicated region
    $region14: #{symptom_mlp.1} parent=1 // pred_check
      _
    $region15: #{symptom_mlp.1} parent=1 // pred_check_branch
      %32 = sbr.rel (0) target = $region17
    $region16: #{symptom_mlp.1} parent=1 // pred_region
      _
    $region17: #{symptom_mlp.1} parent=1 // pred_fallthru
      _
    // Predicated region
    $region18: #{symptom_mlp.1} parent=1 // pred_check
      _
    $region19: #{symptom_mlp.1} parent=1 // pred_check_branch
      %34 = sbr.rel (0) target = $region21
    $region20: #{symptom_mlp.1} parent=1 // pred_region
      _
    $region21: #{symptom_mlp.1} parent=1 // pred_fallthru
      _
    // Predicated region
    $region22: #{symptom_mlp.1} parent=1 // pred_check
      _
    $region23: #{symptom_mlp.1} parent=1 // pred_check_branch
      %36 = sbr.rel (0) target = $region25
    $region24: #{symptom_mlp.1} parent=1 // pred_region
      _
    $region25: #{symptom_mlp.1} parent=1 // pred_fallthru
      _
    // Predicated region
    $region26: #{symptom_mlp.1} parent=1 // pred_check
      _
    $region27: #{symptom_mlp.1} parent=1 // pred_check_branch
      %38 = sbr.rel (0) target = $region29
    $region28: #{symptom_mlp.1} parent=1 // pred_region
      _
    $region29: #{symptom_mlp.1} parent=1 // pred_fallthru
      _
    // Predicated region
    $region30: #{symptom_mlp.1} parent=1 // pred_check
      _
    $region31: #{symptom_mlp.1} parent=1 // pred_check_branch
      %40 = sbr.rel (0) target = $region33
    $region32: #{symptom_mlp.1} parent=1 // pred_region
      %42 = dma.done [#allocation3], 12288
    $region33: #{symptom_mlp.1} parent=1 // pred_fallthru
      _
    %v43 = vld [vmem:[%s0] sm:$0xff]
    %v44 = vld [vmem:[%s0 + $0x8] sm:$0xff]
    %v45 = vld [vmem:[%s0 + $0x10] sm:$0xff]
    %v46 = vld [vmem:[%s0 + $0x18] sm:$0xff]
    %v47 = vld [vmem:[%s0 + $0x20] sm:$0xff]
    %v48 = vld [vmem:[%s0 + $0x28] sm:$0xff]
    %v49 = vld [vmem:[%s0 + $0x30] sm:$0xff]
    %v50 = vld [vmem:[%s0 + $0x38] sm:$0xff]
    %v51 = vld [vmem:[%s0 + $0x40] sm:$0xff]
    %v52 = vld [vmem:[%s0 + $0x48] sm:$0xff]
    %v53 = vld [vmem:[%s0 + $0x50] sm:$0xff]
    %v54 = vld [vmem:[%s0 + $0x58] sm:$0xff]
    %v55 = vld [vmem:[#allocation2] sm:$0xff]
    %v56 = vld [vmem:[#allocation2 + $0x8] sm:$0xff]
    %v57 = vld [vmem:[#allocation2 + $0x10] sm:$0xff]
    %v58 = vld [vmem:[#allocation2 + $0x18] sm:$0xff]
    %v59 = vld [vmem:[#allocation2 + $0x20] sm:$0xff]
    %v60 = vld [vmem:[#allocation2 + $0x28] sm:$0xff]
    %v61 = vld [vmem:[#allocation2 + $0x30] sm:$0xff]
    %v62 = vld [vmem:[#allocation2 + $0x38] sm:$0xff]
    %v63 = vld [vmem:[#allocation2 + $0x40] sm:$0xff]
    %v64 = vld [vmem:[#allocation2 + $0x48] sm:$0xff]
    %v65 = vld [vmem:[#allocation2 + $0x50] sm:$0xff]
    %v66 = vld [vmem:[#allocation2 + $0x58] sm:$0xff]
    %v67 = vld [vmem:[#allocation2 + $0x60] sm:$0xff]
    %v68 = vld [vmem:[#allocation2 + $0x68] sm:$0xff]
    %v69 = vld [vmem:[#allocation2 + $0x70] sm:$0xff]
    %v70 = vld [vmem:[#allocation2 + $0x78] sm:$0xff]
    %v71 = vld [vmem:[#allocation2 + $0x80] sm:$0xff]
    %v72 = vld [vmem:[#allocation2 + $0x88] sm:$0xff]
    %v73 = vld [vmem:[#allocation2 + $0x90] sm:$0xff]
    %v74 = vld [vmem:[#allocation2 + $0x98] sm:$0xff]
    %v75 = vld [vmem:[#allocation2 + $0xa0] sm:$0xff]
    %v76 = vld [vmem:[#allocation2 + $0xa8] sm:$0xff]
    %v77 = vld [vmem:[#allocation2 + $0xb0] sm:$0xff]
    %v78 = vld [vmem:[#allocation2 + $0xb8] sm:$0xff]
    %v79 = vld [vmem:[#allocation2 + $0xc0] sm:$0xff]
    %v80 = vld [vmem:[#allocation2 + $0xc8] sm:$0xff]
    %v81 = vld [vmem:[#allocation2 + $0xd0] sm:$0xff]
    %v82 = vld [vmem:[#allocation2 + $0xd8] sm:$0xff]
    %v83 = vld [vmem:[#allocation2 + $0xe0] sm:$0xff]
    %v84 = vld [vmem:[#allocation2 + $0xe8] sm:$0xff]
    %v85 = vld [vmem:[#allocation2 + $0xf0] sm:$0xff]
    %v86 = vld [vmem:[#allocation2 + $0xf8] sm:$0xff]
    %v87 = vld [vmem:[#allocation2 + $0x100] sm:$0xff]
    %v88 = vld [vmem:[#allocation2 + $0x108] sm:$0xff]
    %v89 = vld [vmem:[#allocation2 + $0x110] sm:$0xff]
    %v90 = vld [vmem:[#allocation2 + $0x118] sm:$0xff]
    %v91 = vld [vmem:[#allocation2 + $0x120] sm:$0xff]
    %v92 = vld [vmem:[#allocation2 + $0x128] sm:$0xff]
    %v93 = vld [vmem:[#allocation2 + $0x130] sm:$0xff]
    %v94 = vld [vmem:[#allocation2 + $0x138] sm:$0xff]
    %v95 = vld [vmem:[#allocation2 + $0x140] sm:$0xff]
    %v96 = vld [vmem:[#allocation2 + $0x148] sm:$0xff]
    %v97 = vld [vmem:[#allocation2 + $0x150] sm:$0xff]
    %v98 = vld [vmem:[#allocation2 + $0x158] sm:$0xff]
    %v99 = vld [vmem:[#allocation2 + $0x160] sm:$0xff]
    %v100 = vld [vmem:[#allocation2 + $0x168] sm:$0xff]
    %v101 = vld [vmem:[#allocation2 + $0x170] sm:$0xff]
    %v102 = vld [vmem:[#allocation2 + $0x178] sm:$0xff]
    %v103 = vld [vmem:[#allocation2 + $0x180] sm:$0xff]
    %v104 = vld [vmem:[#allocation2 + $0x188] sm:$0xff]
    %v105 = vld [vmem:[#allocation2 + $0x190] sm:$0xff]
    %v106 = vld [vmem:[#allocation2 + $0x198] sm:$0xff]
    %v107 = vld [vmem:[#allocation2 + $0x1a0] sm:$0xff]
    %v108 = vld [vmem:[#allocation2 + $0x1a8] sm:$0xff]
    %v109 = vld [vmem:[#allocation2 + $0x1b0] sm:$0xff]
    %v110 = vld [vmem:[#allocation2 + $0x1b8] sm:$0xff]
    %v111 = vld [vmem:[#allocation2 + $0x1c0] sm:$0xff]
    %v112 = vld [vmem:[#allocation2 + $0x1c8] sm:$0xff]
    %v113 = vld [vmem:[#allocation2 + $0x1d0] sm:$0xff]
    %v114 = vld [vmem:[#allocation2 + $0x1d8] sm:$0xff]
    %v115 = vld [vmem:[#allocation2 + $0x1e0] sm:$0xff]
    %v116 = vld [vmem:[#allocation2 + $0x1e8] sm:$0xff]
    %v117 = vld [vmem:[#allocation2 + $0x1f0] sm:$0xff]
    %v118 = vld [vmem:[#allocation2 + $0x1f8] sm:$0xff]
    %v119 = vld [vmem:[#allocation2 + $0x200] sm:$0xff]
    %v120 = vld [vmem:[#allocation2 + $0x208] sm:$0xff]
    %v121 = vld [vmem:[#allocation2 + $0x210] sm:$0xff]
    %v122 = vld [vmem:[#allocation2 + $0x218] sm:$0xff]
    %v123 = vld [vmem:[#allocation2 + $0x220] sm:$0xff]
    %v124 = vld [vmem:[#allocation2 + $0x228] sm:$0xff]
    %v125 = vld [vmem:[#allocation2 + $0x230] sm:$0xff]
    %v126 = vld [vmem:[#allocation2 + $0x238] sm:$0xff]
    %v127 = vld [vmem:[#allocation2 + $0x240] sm:$0xff]
    %v128 = vld [vmem:[#allocation2 + $0x248] sm:$0xff]
    %v129 = vld [vmem:[#allocation2 + $0x250] sm:$0xff]
    %v130 = vld [vmem:[#allocation2 + $0x258] sm:$0xff]
    %v131 = vld [vmem:[#allocation2 + $0x260] sm:$0xff]
    %v132 = vld [vmem:[#allocation2 + $0x268] sm:$0xff]
    %v133 = vld [vmem:[#allocation2 + $0x270] sm:$0xff]
    %v134 = vld [vmem:[#allocation2 + $0x278] sm:$0xff]
    %v135 = vld [vmem:[#allocation2 + $0x280] sm:$0xff]
    %v136 = vld [vmem:[#allocation2 + $0x288] sm:$0xff]
    %v137 = vld [vmem:[#allocation2 + $0x290] sm:$0xff]
    %v138 = vld [vmem:[#allocation2 + $0x298] sm:$0xff]
    %v139 = vld [vmem:[#allocation2 + $0x2a0] sm:$0xff]
    %v140 = vld [vmem:[#allocation2 + $0x2a8] sm:$0xff]
    %v141 = vld [vmem:[#allocation2 + $0x2b0] sm:$0xff]
    %v142 = vld [vmem:[#allocation2 + $0x2b8] sm:$0xff]
    %v143 = vld [vmem:[#allocation2 + $0x2c0] sm:$0xff]
    %v144 = vld [vmem:[#allocation2 + $0x2c8] sm:$0xff]
    %v145 = vld [vmem:[#allocation2 + $0x2d0] sm:$0xff]
    %v146 = vld [vmem:[#allocation2 + $0x2d8] sm:$0xff]
    %v147 = vld [vmem:[#allocation2 + $0x2e0] sm:$0xff]
    %v148 = vld [vmem:[#allocation2 + $0x2e8] sm:$0xff]
    %v149 = vld [vmem:[#allocation2 + $0x2f0] sm:$0xff]
    %v150 = vld [vmem:[#allocation2 + $0x2f8] sm:$0xff]
    %v151 = vld [vmem:[%s2] sm:$0x1]
    %v153 = vperm.slane %v151, 0
    %155 = vmatpush.msra.mxu0 %v70
    %156 = vmatpush.msra.mxu0 %v69
    %157 = vmatpush.msra.mxu0 %v68
    %158 = vmatpush.msra.mxu0 %v67
    %159 = vmatpush.msra.mxu0 %v66
    %160 = vmatpush.msra.mxu0 %v65
    %161 = vmatpush.msra.mxu0 %v64
    %162 = vmatpush.msra.mxu0 %v63
    %163 = vmatpush.msra.mxu0 %v62
    %164 = vmatpush.msra.mxu0 %v61
    %165 = vmatpush.msra.mxu0 %v60
    %166 = vmatpush.msra.mxu0 %v59
    %167 = vmatpush.msra.mxu0 %v58
    %168 = vmatpush.msra.mxu0 %v57
    %169 = vmatpush.msra.mxu0 %v56
    %170 = vmatpush.msra.mxu0 %v55
    %171 = vmatmul.f32.gmra.mxu0 %v43
    %v172 = vpop.f32.mrf.mxu0
    %v173 = vadd.f32 %v153, %v172
    %174 = vmatmul.f32.gmra.mxu0 %v49
    %v175 = vpop.f32.mrf.mxu0
    %v176 = vadd.f32 %v153, %v175
    %177 = vdwg.mxu0
    %178 = vmatpush.msra.mxu0 %v86
    %179 = vmatpush.msra.mxu0 %v85
    %180 = vmatpush.msra.mxu0 %v84
    %181 = vmatpush.msra.mxu0 %v83
    %182 = vmatpush.msra.mxu0 %v82
    %183 = vmatpush.msra.mxu0 %v81
    %184 = vmatpush.msra.mxu0 %v80
    %185 = vmatpush.msra.mxu0 %v79
    %186 = vmatpush.msra.mxu0 %v78
    %187 = vmatpush.msra.mxu0 %v77
    %188 = vmatpush.msra.mxu0 %v76
    %189 = vmatpush.msra.mxu0 %v75
    %190 = vmatpush.msra.mxu0 %v74
    %191 = vmatpush.msra.mxu0 %v73
    %192 = vmatpush.msra.mxu0 %v72
    %193 = vmatpush.msra.mxu0 %v71
    %194 = vmatmul.f32.gmra.mxu0 %v44
    %v195 = vpop.f32.mrf.mxu0
    %v196 = vadd.f32 %v173, %v195
    %197 = vmatmul.f32.gmra.mxu0 %v50
    %v198 = vpop.f32.mrf.mxu0
    %v199 = vadd.f32 %v176, %v198
    %200 = vdwg.mxu0
    %201 = vmatpush.msra.mxu0 %v102
    %202 = vmatpush.msra.mxu0 %v101
    %203 = vmatpush.msra.mxu0 %v100
    %204 = vmatpush.msra.mxu0 %v99
    %205 = vmatpush.msra.mxu0 %v98
    %206 = vmatpush.msra.mxu0 %v97
    %207 = vmatpush.msra.mxu0 %v96
    %208 = vmatpush.msra.mxu0 %v95
    %209 = vmatpush.msra.mxu0 %v94
    %210 = vmatpush.msra.mxu0 %v93
    %211 = vmatpush.msra.mxu0 %v92
    %212 = vmatpush.msra.mxu0 %v91
    %213 = vmatpush.msra.mxu0 %v90
    %214 = vmatpush.msra.mxu0 %v89
    %215 = vmatpush.msra.mxu0 %v88
    %216 = vmatpush.msra.mxu0 %v87
    %217 = vmatmul.f32.gmra.mxu0 %v45
    %v218 = vpop.f32.mrf.mxu0
    %v219 = vadd.f32 %v196, %v218
    %220 = vmatmul.f32.gmra.mxu0 %v51
    %v221 = vpop.f32.mrf.mxu0
    %v222 = vadd.f32 %v199, %v221
    %223 = vdwg.mxu0
    %224 = vmatpush.msra.mxu0 %v118
    %225 = vmatpush.msra.mxu0 %v117
    %226 = vmatpush.msra.mxu0 %v116
    %227 = vmatpush.msra.mxu0 %v115
    %228 = vmatpush.msra.mxu0 %v114
    %229 = vmatpush.msra.mxu0 %v113
    %230 = vmatpush.msra.mxu0 %v112
    %231 = vmatpush.msra.mxu0 %v111
    %232 = vmatpush.msra.mxu0 %v110
    %233 = vmatpush.msra.mxu0 %v109
    %234 = vmatpush.msra.mxu0 %v108
    %235 = vmatpush.msra.mxu0 %v107
    %236 = vmatpush.msra.mxu0 %v106
    %237 = vmatpush.msra.mxu0 %v105
    %238 = vmatpush.msra.mxu0 %v104
    %239 = vmatpush.msra.mxu0 %v103
    %240 = vmatmul.f32.gmra.mxu0 %v46
    %v241 = vpop.f32.mrf.mxu0
    %v242 = vadd.f32 %v219, %v241
    %243 = vmatmul.f32.gmra.mxu0 %v52
    %v244 = vpop.f32.mrf.mxu0
    %v245 = vadd.f32 %v222, %v244
    %246 = vdwg.mxu0
    %247 = vmatpush.msra.mxu0 %v134
    %248 = vmatpush.msra.mxu0 %v133
    %249 = vmatpush.msra.mxu0 %v132
    %250 = vmatpush.msra.mxu0 %v131
    %251 = vmatpush.msra.mxu0 %v130
    %252 = vmatpush.msra.mxu0 %v129
    %253 = vmatpush.msra.mxu0 %v128
    %254 = vmatpush.msra.mxu0 %v127
    %255 = vmatpush.msra.mxu0 %v126
    %256 = vmatpush.msra.mxu0 %v125
    %257 = vmatpush.msra.mxu0 %v124
    %258 = vmatpush.msra.mxu0 %v123
    %259 = vmatpush.msra.mxu0 %v122
    %260 = vmatpush.msra.mxu0 %v121
    %261 = vmatpush.msra.mxu0 %v120
    %262 = vmatpush.msra.mxu0 %v119
    %263 = vmatmul.f32.gmra.mxu0 %v47
    %v264 = vpop.f32.mrf.mxu0
    %v265 = vadd.f32 %v242, %v264
    %266 = vmatmul.f32.gmra.mxu0 %v53
    %v267 = vpop.f32.mrf.mxu0
    %v268 = vadd.f32 %v245, %v267
    %269 = vdwg.mxu0
    %270 = vmatpush.msra.mxu0 %v150
    %271 = vmatpush.msra.mxu0 %v149
    %272 = vmatpush.msra.mxu0 %v148
    %273 = vmatpush.msra.mxu0 %v147
    %274 = vmatpush.msra.mxu0 %v146
    %275 = vmatpush.msra.mxu0 %v145
    %276 = vmatpush.msra.mxu0 %v144
    %277 = vmatpush.msra.mxu0 %v143
    %278 = vmatpush.msra.mxu0 %v142
    %279 = vmatpush.msra.mxu0 %v141
    %280 = vmatpush.msra.mxu0 %v140
    %281 = vmatpush.msra.mxu0 %v139
    %282 = vmatpush.msra.mxu0 %v138
    %283 = vmatpush.msra.mxu0 %v137
    %284 = vmatpush.msra.mxu0 %v136
    %285 = vmatpush.msra.mxu0 %v135
    %286 = vmatmul.f32.gmra.mxu0 %v48
    %v287 = vpop.f32.mrf.mxu0
    %v288 = vadd.f32 %v265, %v287
    %289 = vmatmul.f32.gmra.mxu0 %v54
    %v290 = vpop.f32.mrf.mxu0
    %v291 = vadd.f32 %v268, %v290
    %292 = vdwg.mxu0
    %293 = vadd.xlane.f32.xlu0 %v288
    %v294 = vpop.xlane.xlu0 %293
    %295 = vadd.xlane.f32.xlu0 %v291
    %v296 = vpop.xlane.xlu0 %295
    %v297 = vrcp.pop 128.0
    %v298 = vmul.f32 128.0, %v297
    %v299 = vsub.f32 1.0, %v298
    %v300 = vmul.f32 %v297, %v299
    %v301 = vadd.f32 %v297, %v300
    %vm302 = vweird.f32 %v297
    %v303 = vsel %vm302, %v297, %v301
    %v304 = vmul.f32 %v294, %v303
    %v305 = vmul.f32 %v296, %v303
    %v306 = vsub.f32 %v288, %v304
    %v307 = vsub.f32 %v291, %v305
    %v308 = vmul.f32 %v306, %v306
    %v309 = vmul.f32 %v307, %v307
    %310 = vadd.xlane.f32.xlu0 %v308
    %v311 = vpop.xlane.xlu0 %310
    %312 = vadd.xlane.f32.xlu0 %v309
    %v313 = vpop.xlane.xlu0 %312
    %v314 = vmul.f32 %v311, %v303
    %v315 = vmul.f32 %v313, %v303
    %v316 = vadd.f32 %v314, 1e-05
    %v317 = vadd.f32 %v315, 1e-05
    %v318 = vrsqrt.pop %v316
    %v319 = vmul.f32 %v318, %v316
    %v320 = vmul.f32 %v319, %v318
    %v321 = vmul.f32 0.5, %v320
    %v322 = vsub.f32 1.5, %v321
    %v323 = vmul.f32 %v318, %v322
    %vm324 = vweird.f32 %v316
    %vm325 = vweird.f32 %v318
    %vm326 = vmor %vm324, %vm325
    %v327 = vsel %vm326, %v318, %v323
    %v328 = vrsqrt.pop %v317
    %v329 = vmul.f32 %v328, %v317
    %v330 = vmul.f32 %v329, %v328
    %v331 = vmul.f32 0.5, %v330
    %v332 = vsub.f32 1.5, %v331
    %v333 = vmul.f32 %v328, %v332
    %vm334 = vweird.f32 %v317
    %vm335 = vweird.f32 %v328
    %vm336 = vmor %vm334, %vm335
    %v337 = vsel %vm336, %v328, %v333
    %v338 = vmul.f32 %v306, %v327
    %v339 = vmul.f32 %v307, %v337
    %v340 = vld [vmem:[%s3] sm:$0x1]
    %v342 = vperm.slane %v340, 0
    %v344 = vmul.f32 %v338, %v342
    %v345 = vmul.f32 %v339, %v342
    %v346 = vld [vmem:[%s4] sm:$0x1]
    %v348 = vperm.slane %v346, 0
    %v350 = vadd.f32 %v344, %v348
    %v351 = vadd.f32 %v345, %v348
    %v352 = vmax.f32 %v350, 0.0
    %v353 = vmax.f32 %v351, 0.0
    %v354 = vld [vmem:[%s5] sm:$0xff]
    %v355 = vld [vmem:[%s5 + $0x8] sm:$0xff]
    %v356 = vld [vmem:[%s5 + $0x10] sm:$0xff]
    %v357 = vld [vmem:[%s5 + $0x18] sm:$0xff]
    %v358 = vld [vmem:[%s5 + $0x20] sm:$0xff]
    %v359 = vld [vmem:[%s5 + $0x28] sm:$0xff]
    %v360 = vld [vmem:[%s5 + $0x30] sm:$0xff]
    %v361 = vld [vmem:[%s5 + $0x38] sm:$0xff]
    %v362 = vld [vmem:[%s5 + $0x40] sm:$0xff]
    %v363 = vld [vmem:[%s5 + $0x48] sm:$0xff]
    %v364 = vld [vmem:[%s5 + $0x50] sm:$0xff]
    %v365 = vld [vmem:[%s5 + $0x58] sm:$0xff]
    %v366 = vld [vmem:[%s5 + $0x60] sm:$0xff]
    %v367 = vld [vmem:[%s5 + $0x68] sm:$0xff]
    %v368 = vld [vmem:[%s5 + $0x70] sm:$0xff]
    %v369 = vld [vmem:[%s5 + $0x78] sm:$0xff]
    %v370 = vld [vmem:[%s6] sm:$0x1]
    %v372 = vperm.slane %v370, 0
    %374 = vmatpush.msra.mxu0 %v369
    %375 = vmatpush.msra.mxu0 %v368
    %376 = vmatpush.msra.mxu0 %v367
    %377 = vmatpush.msra.mxu0 %v366
    %378 = vmatpush.msra.mxu0 %v365
    %379 = vmatpush.msra.mxu0 %v364
    %380 = vmatpush.msra.mxu0 %v363
    %381 = vmatpush.msra.mxu0 %v362
    %382 = vmatpush.msra.mxu0 %v361
    %383 = vmatpush.msra.mxu0 %v360
    %384 = vmatpush.msra.mxu0 %v359
    %385 = vmatpush.msra.mxu0 %v358
    %386 = vmatpush.msra.mxu0 %v357
    %387 = vmatpush.msra.mxu0 %v356
    %388 = vmatpush.msra.mxu0 %v355
    %389 = vmatpush.msra.mxu0 %v354
    %390 = vmatmul.f32.gmra.mxu0 %v352
    %v391 = vpop.f32.mrf.mxu0
    %v392 = vadd.f32 %v372, %v391
    %393 = vmatmul.f32.gmra.mxu0 %v353
    %v394 = vpop.f32.mrf.mxu0
    %v395 = vadd.f32 %v372, %v394
    %396 = vdwg.mxu0
    %397 = vst [vmem:[#allocation5] sm:$0xff] %v392
    %398 = vst [vmem:[#allocation5 + $0x8] sm:$0xff] %v395
    // Predicated region
    $region34: #{symptom_mlp.1} parent=1 // pred_check
      _
    $region35: #{symptom_mlp.1} parent=1 // pred_check_branch
      %400 = sbr.rel (0) target = $region37
    $region36: #{symptom_mlp.1} parent=1 // pred_region
      %402 = vsyncadd [#allocation4], 0
      %s403 = sshll.u32 [#allocation5], 4
      %s404 = int_to_ptr.vmem [resolvable:$true] %s403
      %s405 = sshll.u32 %s7, 4
      %s406 = int_to_ptr.hbm [resolvable:$true] %s405
      %411 = dma.vmem_to_hbm [thread:$0]  %s404, 256, %s406, [#allocation4], 128, 128, 8
    $region37: #{symptom_mlp.1} parent=1 // pred_fallthru
      _
    // Predicated region
    $region38: #{symptom_mlp.1} parent=1 // pred_check
      _
    $region39: #{symptom_mlp.1} parent=1 // pred_check_branch
      %413 = sbr.rel (0) target = $region41
    $region40: #{symptom_mlp.1} parent=1 // pred_region
      %415 = dma.done [#allocation4], 256
    $region41: #{symptom_mlp.1} parent=1 // pred_fallthru
      _
    %416 = vsyncpa [#allocation3], 1
    %417 = vsyncpa [#allocation4], 1

</llo_original>
